<compile_context>
chip_gen: v5e
topology: v5e:2x2
jax: 0.10.0
libtpu: 0.0.40
codegen_flags: <defaults>
</compile_context>

<pallas_src>
import jax
import jax.numpy as jnp
from jax import lax
from jax.experimental import pallas as pl
from jax.experimental.pallas import tpu as pltpu


_SUBLANES = 8            # f32 sublanes per vreg tile
_HBM_INFLIGHT = 8        # outstanding single-row DMAs in the HBM gather path
_ONEHOT_MAX_ROWS = 2048  # one-hot MXU gather only for tables up to this many rows
_ONEHOT_MAX_BYTES = 8 << 20  # cap on the (TB, n_rows) one-hot intermediate


def _round_up(x: int, m: int) -> int:
    return ((x + m - 1) // m) * m


def _vmem_capacity_bytes() -> int:
    """Per-core VMEM capacity; device-kind-aware fallback if the query fails."""
    try:
        return int(pltpu.get_tpu_info().vmem_capacity_bytes)
    except Exception:
        pass
    try:
        kind = jax.devices()[0].device_kind.lower()
    except Exception:
        kind = ""
    # v7x: 64 MiB / TensorCore; v5e / v6e: 128 MiB.
    return (64 if "v7" in kind else 128) * 1024 * 1024


def _maybe_vmem_limit(needed_bytes: int, capacity: int):
    # The scoped-VMEM default is only 16-32 MiB; raise it when the kernel
    # needs more.  The limit is not an allocation, so size it generously.
    if needed_bytes <= 16 * 1024 * 1024:
        return None
    return int(min(needed_bytes + (4 << 20), int(capacity * 0.9)))


# ---------------------------------------------------------------------------
# Fast path A: one-hot MXU gather (small VMEM-resident table).
# ---------------------------------------------------------------------------
def _onehot_gather_kernel(ids_ref, table_ref, out_ref):
    # ids_ref:   VMEM (TB, 1) int32
    # table_ref: VMEM (n_rows, D) -- constant block index, resident
    # out_ref:   VMEM (TB, D)
    tb = out_ref.shape[0]
    n_rows = table_ref.shape[0]
    ids = ids_ref[...]                                           # (TB, 1)
    cols = lax.broadcasted_iota(jnp.int32, (tb, n_rows), 1)
    one_hot = (cols == ids).astype(table_ref.dtype)              # one 1.0 per row
    out_ref[...] = jnp.dot(
        one_hot, table_ref[...], preferred_element_type=jnp.float32
    ).astype(out_ref.dtype)


# ---------------------------------------------------------------------------
# Fast path B: chunked (coalesced) row gather from a VMEM-resident table.
# ---------------------------------------------------------------------------
def _chunked_gather_kernel(ids_ref, table_ref, out_ref):
    # ids_ref:   SMEM (padded_batch,) int32 (scalar prefetch)
    # table_ref: VMEM (n_rows, D) -- constant block index, resident
    # out_ref:   VMEM (TB, D)
    tb = out_ref.shape[0]
    base = pl.program_id(0) * tb
    n_chunks = tb // _SUBLANES

    def chunk(c, carry):
        off = base + c * _SUBLANES
        # Eight 1-sublane dynamic loads, one full (8, D) unmasked store.
        rows = [table_ref[pl.ds(ids_ref[off + r], 1), :] for r in range(_SUBLANES)]
        dst = pl.multiple_of(c * _SUBLANES, _SUBLANES)
        out_ref[pl.ds(dst, _SUBLANES), :] = jnp.concatenate(rows, axis=0)
        return carry

    lax.fori_loop(0, n_chunks, chunk, jnp.int32(0),
                  unroll=True if n_chunks <= 8 else 4)


# ---------------------------------------------------------------------------
# Fallback path: table stays in HBM; manual multi-outstanding row DMAs.
# ---------------------------------------------------------------------------
def _make_hbm_gather_kernel(tb: int, inflight: int):
    def kernel(ids_ref, table_hbm, out_ref, buf_ref, sems):
        # ids_ref:   SMEM (padded_batch,) int32 (scalar prefetch)
        # table_hbm: HBM  (n_rows, D)   (memory_space=pl.ANY)
        # out_ref:   VMEM (TB, D) output tile
        # buf_ref:   VMEM (TB, D) gather staging buffer
        # sems:      DMA semaphores, `inflight` rolling slots
        base = pl.program_id(0) * tb

        def issue(s):
            pltpu.make_async_copy(
                table_hbm.at[pl.ds(ids_ref[base + s], 1), :],
                buf_ref.at[pl.ds(s, 1), :],
                sems.at[s % inflight],
            ).start()

        def wait(s):
            # Size-matched descriptor: only semaphore / byte count matter.
            pltpu.make_async_copy(
                table_hbm.at[pl.ds(0, 1), :],
                buf_ref.at[pl.ds(0, 1), :],
                sems.at[s % inflight],
            ).wait()

        def prime(s, c):
            issue(s)
            return c

        def steady(s, c):
            wait(s - inflight)   # oldest outstanding DMA on this slot
            issue(s)
            return c

        def drain(s, c):
            wait(s)
            return c

        lax.fori_loop(0, min(inflight, tb), prime, jnp.int32(0), unroll=True)
        lax.fori_loop(inflight, tb, steady, jnp.int32(0))
        lax.fori_loop(max(tb - inflight, 0), tb, drain, jnp.int32(0), unroll=True)

        # Single coalesced writeback of the gathered tile.
        out_ref[...] = buf_ref[...]

    return kernel


# ---------------------------------------------------------------------------
# pallas_call wrappers
# ---------------------------------------------------------------------------
def _resident_table_spec(n_rows, dim, index_map, single_buffer):
    """Whole-table block with a constant index (DMA'd once, stays resident)."""
    if single_buffer:
        # Keep the compiler from double-buffering the resident table, which
        # would halve the largest table eligible for the fast path.
        return pl.BlockSpec((n_rows, dim), index_map, pipeline_mode=pl.Buffered(1))
    return pl.BlockSpec((n_rows, dim), index_map)


def _fast_path(ids, table, *, tb, n_tiles, padded_batch, onehot, semantics,
               capacity, single_buffer):
    n_rows, dim = table.shape
    itemsize = jnp.dtype(table.dtype).itemsize
    table_bytes = n_rows * dim * itemsize
    out_tile_bytes = tb * dim * itemsize

    # Budget generously (covers the double-buffered fallback); the limit is
    # not an allocation, it only has to be >= what Mosaic actually uses.
    needed = 2 * table_bytes + 2 * out_tile_bytes + (1 << 20)
    if onehot:
        needed += 3 * tb * n_rows * 4  # iota / one-hot intermediates
    cp = pltpu.CompilerParams(
        dimension_semantics=(semantics,),
        vmem_limit_bytes=_maybe_vmem_limit(needed, capacity),
    )
    out_shape = jax.ShapeDtypeStruct((padded_batch, dim), table.dtype)

    if onehot:
        table_spec = _resident_table_spec(n_rows, dim, lambda i: (0, 0),
                                          single_buffer)
        return pl.pallas_call(
            _onehot_gather_kernel,
            out_shape=out_shape,
            grid=(n_tiles,),
            in_specs=[pl.BlockSpec((tb, 1), lambda i: (i, 0)), table_spec],
            out_specs=pl.BlockSpec((tb, dim), lambda i: (i, 0)),
            compiler_params=cp,
        )(ids.reshape(padded_batch, 1), table)

    table_spec = _resident_table_spec(n_rows, dim, lambda i, _ids: (0, 0),
                                      single_buffer)
    grid_spec = pltpu.PrefetchScalarGridSpec(
        num_scalar_prefetch=1,
        grid=(n_tiles,),
        in_specs=[table_spec],
        out_specs=pl.BlockSpec((tb, dim), lambda i, _ids: (i, 0)),
    )
    return pl.pallas_call(
        _chunked_gather_kernel,
        out_shape=out_shape,
        grid_spec=grid_spec,
        compiler_params=cp,
    )(ids, table)


def _hbm_gather(ids, table, *, tb, n_tiles, padded_batch):
    n_rows, dim = table.shape
    grid_spec = pltpu.PrefetchScalarGridSpec(
        num_scalar_prefetch=1,
        grid=(n_tiles,),
        in_specs=[pl.BlockSpec(memory_space=pl.ANY)],     # raw HBM table ref
        out_specs=pl.BlockSpec((tb, dim), lambda i, _ids: (i, 0)),
        scratch_shapes=[
            pltpu.VMEM((tb, dim), table.dtype),
            pltpu.SemaphoreType.DMA((_HBM_INFLIGHT,)),
        ],
    )
    return pl.pallas_call(
        _make_hbm_gather_kernel(tb, _HBM_INFLIGHT),
        out_shape=jax.ShapeDtypeStruct((padded_batch, dim), table.dtype),
        grid_spec=grid_spec,
        compiler_params=pltpu.CompilerParams(dimension_semantics=("parallel",)),
    )(ids, table)


def embedding_lookup(
    input_ids: jax.Array,
    table: jax.Array,
    *,
    block_rows: int = 512,
    force_path: str | None = None,   # None | "onehot" | "chunked" | "hbm"
) -> jax.Array:
    """Pallas TPU gather: out[i, :] = table[input_ids[i], :]."""
    assert input_ids.ndim == 1 and table.ndim == 2
    input_ids = input_ids.astype(jnp.int32)
    n_rows, dim = table.shape
    batch = input_ids.shape[0]
    itemsize = jnp.dtype(table.dtype).itemsize

    # Batch tile: multiple of 8 sublanes, big enough to amortize the
    # ~0.35us/grid-step overhead, capped so the double-buffered (TB, D)
    # output tile stays in the low MiB even for wide embeddings.
    cap_rows = max(_SUBLANES,
                   ((4 << 20) // max(1, 2 * dim * itemsize)) // _SUBLANES * _SUBLANES)
    tb = _round_up(
        max(_SUBLANES, min(block_rows, _round_up(batch, _SUBLANES), cap_rows)),
        _SUBLANES)
    padded_batch = _round_up(batch, tb)
    # Pad with id 0 (always a valid row); padded rows are sliced off below.
    ids = (input_ids if padded_batch == batch
           else jnp.pad(input_ids, (0, padded_batch - batch)))
    n_tiles = padded_batch // tb

    capacity = _vmem_capacity_bytes()
    table_bytes = n_rows * dim * itemsize
    batch_bytes = padded_batch * dim * itemsize
    out_tile_bytes = tb * dim * itemsize

    # Traffic-aware path choice: the resident-table fast path streams the
    # whole table HBM->VMEM, so only take it when that cost is comparable to
    # the batch traffic (or the table is trivially small), and when the
    # single-buffered table actually fits in VMEM.
    traffic_ok = table_bytes <= max(4 * batch_bytes, 2 << 20)
    fits_vmem = (table_bytes + 2 * out_tile_bytes + (1 << 20)) <= int(0.8 * capacity)
    onehot_ok = (n_rows <= _ONEHOT_MAX_ROWS
                 and tb * n_rows * 4 <= _ONEHOT_MAX_BYTES)

    if force_path is not None:
        path = force_path
    elif not (traffic_ok and fits_vmem):
        path = "hbm"
    elif onehot_ok:
        path = "onehot"
    else:
        path = "chunked"

    if path == "hbm":
        out = _hbm_gather(ids, table, tb=tb, n_tiles=n_tiles,
                          padded_batch=padded_batch)
    elif path in ("onehot", "chunked"):
        # v7x has 2 TensorCores: a "parallel" grid makes each core DMA its
        # own copy of the resident table, so only go parallel when the
        # per-core writeback traffic clearly dominates the duplicated read.
        semantics = ("parallel"
                     if (n_tiles > 1 and batch_bytes >= 2 * table_bytes)
                     else "arbitrary")
        kwargs = dict(tb=tb, n_tiles=n_tiles, padded_batch=padded_batch,
                      onehot=(path == "onehot"), semantics=semantics,
                      capacity=capacity)
        try:
            out = _fast_path(ids, table, single_buffer=True, **kwargs)
        except Exception:
            # pl.Buffered(1) not supported by this jax/Mosaic build; the
            # default (double-buffered) resident table is still correct.
            out = _fast_path(ids, table, single_buffer=False, **kwargs)
    else:
        raise ValueError(f"unknown path {path!r}")

    return out[:batch] if padded_batch != batch else out


# ---------------------------------------------------------------------------
# TransE module glue (init + forward), matching the PyTorch reference.
# ---------------------------------------------------------------------------
def init_transe_params(entity_num: int, relation_num: int, dim_num: int, key):
    """Deterministic re-implementation of TransE.__init__ parameter setup."""
    bound = 6.0 / jnp.sqrt(jnp.float32(dim_num))
    k_ent, k_rel = jax.random.split(key)
    ent = jax.random.uniform(k_ent, (entity_num, dim_num), jnp.float32,
                             minval=-bound, maxval=bound)
    rel = jax.random.uniform(k_rel, (relation_num, dim_num), jnp.float32,
                             minval=-bound, maxval=bound)
    ent = ent / jnp.linalg.norm(ent, ord=2, axis=-1, keepdims=True)
    rel = rel / jnp.linalg.norm(rel, ord=2, axis=-1, keepdims=True)
    return ent, rel


def transe_forward(input_ids, entity_table, relation_table,
                   entity: bool = False, **kw):
    """Mirrors TransE.forward: select table by flag, then gather rows."""
    table = entity_table if entity else relation_table
    return embedding_lookup(input_ids, table, **kw)


if __name__ == "__main__":
    entity_num, relation_num, dim_num = 64, 16, 128
    batch = 12  # not a multiple of 8: exercises batch-tile padding

    key = jax.random.PRNGKey(0)
    k_params, k_rel_ids, k_ent_ids = jax.random.split(key, 3)
    entity_table, relation_table = init_transe_params(
        entity_num, relation_num, dim_num, k_params)

    rel_ids = jax.random.randint(k_rel_ids, (batch,), 0, relation_num,
                                 dtype=jnp.int32)
    ent_ids = jax.random.randint(k_ent_ids, (batch,), 0, entity_num,
                                 dtype=jnp.int32)

    # forward(entity=False): relation lookup -> one-hot MXU fast path.
    rel_out = jax.block_until_ready(
        transe_forward(rel_ids, entity_table, relation_table, entity=False))

    # forward(entity=True): entity lookup; force the chunked VMEM-resident
    # gather with a small batch tile so the grid has more than one step.
    ent_out = jax.block_until_ready(
        transe_forward(ent_ids, entity_table, relation_table, entity=True,
                       block_rows=8, force_path="chunked"))

    # Large-table fallback: manual multi-outstanding DMA row gather.
    ent_out_hbm = jax.block_until_ready(
        transe_forward(ent_ids, entity_table, relation_table, entity=True,
                       block_rows=8, force_path="hbm"))

    # Cross-check against plain JAX gather (reference semantics).
    assert rel_out.shape == (batch, dim_num) and rel_out.dtype == jnp.float32
    assert ent_out.shape == (batch, dim_num) and ent_out.dtype == jnp.float32
    assert jnp.allclose(rel_out, relation_table[rel_ids])
    assert jnp.allclose(ent_out, entity_table[ent_ids])
    assert jnp.allclose(ent_out_hbm, entity_table[ent_ids])

    print("KERNEL_OK")
</pallas_src>

<mosaic_0001>
module attributes {stable_mosaic.version = 11 : i64} {
  func.func @_onehot_gather_kernel(%arg0: i32, %arg1: memref<16x1xi32, #tpu.memory_space<vmem>>, %arg2: memref<16x128xf32, #tpu.memory_space<vmem>>, %arg3: memref<16x128xf32, #tpu.memory_space<vmem>>) attributes {dimension_semantics = [#tpu.dimension_semantics<arbitrary>], iteration_bounds = array<i64: 1>, scalar_prefetch = 0 : i64, scratch_operands = 0 : i64, tpu.core_type = #tpu.core_type<tc>, window_params = [{transform_indices = @transform_0, window_bounds = array<i64: 16, 1>}, {pipeline_mode = #tpu.pipeline_mode<synchronous>, transform_indices = @transform_1, window_bounds = array<i64: 16, 128>}, {transform_indices = @transform_2, window_bounds = array<i64: 16, 128>}]} {
    %c0 = arith.constant 0 : index
    %c0_0 = arith.constant 0 : index
    %0 = vector.load %arg1[%c0, %c0_0] : memref<16x1xi32, #tpu.memory_space<vmem>>, vector<16x1xi32>
    %1 = tpu.iota {dimensions = array<i32: 1>} : vector<16x16xi32>
    %2 = vector.broadcast %0 : vector<16x1xi32> to vector<16x16xi32>
    %3 = arith.cmpi eq, %1, %2 : vector<16x16xi32>
    %4 = arith.extui %3 : vector<16x16xi1> to vector<16x16xi32>
    %5 = arith.sitofp %4 : vector<16x16xi32> to vector<16x16xf32>
    %c0_1 = arith.constant 0 : index
    %c0_2 = arith.constant 0 : index
    %6 = vector.load %arg2[%c0_1, %c0_2] : memref<16x128xf32, #tpu.memory_space<vmem>>, vector<16x128xf32>
    %cst = arith.constant dense<0.000000e+00> : vector<16x128xf32>
    %7 = tpu.matmul %5, %6, %cst {dimension_numbers = #tpu.dot_dimension_numbers<[1], [0], [0], [1], [0, 0, 1, 1], [], []>} : vector<16x16xf32>, vector<16x128xf32>, vector<16x128xf32> -> vector<16x128xf32>
    %c0_3 = arith.constant 0 : index
    %c0_4 = arith.constant 0 : index
    %8 = vector.load %arg3[%c0_3, %c0_4] : memref<16x128xf32, #tpu.memory_space<vmem>>, vector<16x128xf32>
    tpu.vector_store %arg3[%c0_3, %c0_4], %7 {strides = array<i32>} : memref<16x128xf32, #tpu.memory_space<vmem>>, vector<16x128xf32>,
    return
  }
  func.func @transform_0(%arg0: i32) -> (i32, i32) {
    %c0_i32 = arith.constant 0 : i32
    %c0_i32_0 = arith.constant 0 : i32
    return %arg0, %c0_i32 : i32, i32
  }
  func.func @transform_1(%arg0: i32) -> (i32, i32) {
    %c0_i32 = arith.constant 0 : i32
    %c0_i32_0 = arith.constant 0 : i32
    %c0_i32_1 = arith.constant 0 : i32
    return %c0_i32, %c0_i32_0 : i32, i32
  }
  func.func @transform_2(%arg0: i32) -> (i32, i32) {
    %c0_i32 = arith.constant 0 : i32
    %c0_i32_0 = arith.constant 0 : i32
    return %arg0, %c0_i32 : i32, i32
  }
}

module attributes {stable_mosaic.version = 11 : i64} {
  func.func @_onehot_gather_kernel(%arg0: i32, %arg1: memref<16x1xi32, #tpu.memory_space<vmem>>, %arg2: memref<16x128xf32, #tpu.memory_space<vmem>>, %arg3: memref<16x128xf32, #tpu.memory_space<vmem>>) attributes {dimension_semantics = [#tpu.dimension_semantics<arbitrary>], iteration_bounds = array<i64: 1>, scalar_prefetch = 0 : i64, scratch_operands = 0 : i64, tpu.core_type = #tpu.core_type<tc>, window_params = [{transform_indices = @transform_0, window_bounds = array<i64: 16, 1>}, {pipeline_mode = #tpu.pipeline_mode<synchronous>, transform_indices = @transform_1, window_bounds = array<i64: 16, 128>}, {transform_indices = @transform_2, window_bounds = array<i64: 16, 128>}]} {
    %c0 = arith.constant 0 : index
    %c0_0 = arith.constant 0 : index
    %0 = vector.load %arg1[%c0, %c0_0] : memref<16x1xi32, #tpu.memory_space<vmem>>, vector<16x1xi32>
    %1 = tpu.iota {dimensions = array<i32: 1>} : vector<16x16xi32>
    %2 = vector.broadcast %0 : vector<16x1xi32> to vector<16x16xi32>
    %3 = arith.cmpi eq, %1, %2 : vector<16x16xi32>
    %4 = arith.extui %3 : vector<16x16xi1> to vector<16x16xi32>
    %5 = arith.sitofp %4 : vector<16x16xi32> to vector<16x16xf32>
    %c0_1 = arith.constant 0 : index
    %c0_2 = arith.constant 0 : index
    %6 = vector.load %arg2[%c0_1, %c0_2] : memref<16x128xf32, #tpu.memory_space<vmem>>, vector<16x128xf32>
    %cst = arith.constant dense<0.000000e+00> : vector<16x128xf32>
    %7 = tpu.matmul %5, %6, %cst {dimension_numbers = #tpu.dot_dimension_numbers<[1], [0], [0], [1], [0, 0, 1, 1], [], []>} : vector<16x16xf32>, vector<16x128xf32>, vector<16x128xf32> -> vector<16x128xf32>
    %c0_3 = arith.constant 0 : index
    %c0_4 = arith.constant 0 : index
    %8 = vector.load %arg3[%c0_3, %c0_4] : memref<16x128xf32, #tpu.memory_space<vmem>>, vector<16x128xf32>
    tpu.vector_store %arg3[%c0_3, %c0_4], %7 {strides = array<i32>} : memref<16x128xf32, #tpu.memory_space<vmem>>, vector<16x128xf32>,
    return
  }
  func.func @transform_0(%arg0: i32) -> (i32, i32) {
    %c0_i32 = arith.constant 0 : i32
    %c0_i32_0 = arith.constant 0 : i32
    return %arg0, %c0_i32 : i32, i32
  }
  func.func @transform_1(%arg0: i32) -> (i32, i32) {
    %c0_i32 = arith.constant 0 : i32
    %c0_i32_0 = arith.constant 0 : i32
    %c0_i32_1 = arith.constant 0 : i32
    return %c0_i32, %c0_i32_0 : i32, i32
  }
  func.func @transform_2(%arg0: i32) -> (i32, i32) {
    %c0_i32 = arith.constant 0 : i32
    %c0_i32_0 = arith.constant 0 : i32
    return %arg0, %c0_i32 : i32, i32
  }
}

</mosaic_0001>

<llo_original>
// kernel: tpu_custom_call.1
$region0: #{tpu_custom_call.1}
  #allocation0 [shape = 'u32[]', space=smem, size = 0x4, offset = 0x4, fixed_abs, tag = 'smem constant byte address 0x4 - core index']
  #allocation1 [shape = 'u32[72,128]{1,0:T(1,128)}', space=vmem, size = 0x9000, scoped, tag = 'internal scratch']
  %s0 = inlined_call_operand.vmem [shape: s32[16,1], index: 0, kind: input, shape index: {}]
  %s1 = inlined_call_operand.vmem [shape: f32[16,128], index: 1, kind: input, shape index: {}]
  %s2 = inlined_call_operand.hbm [shape: f32[16,128], index: 2, kind: output, shape index: {}]
  %s3 = sld [smem:[#allocation0]]
  $region18: #{tpu_custom_call.1} parent=0
    _
  %s5 = ssub.s32 1, %s3
  %s6 = scalar_select 0, %s5, %s3
  $region1: #{tpu_custom_call.1} parent=0
    #allocation2 [shape = 'u8[8192]{0}', space=vmem, size = 0x2000, scoped, tag = 'output window, operand 0, single buffered']
    #allocation3 [shape = 's32[1]{0}', space=sflag, size = 0x4, scoped, tag = 'scoped memory for tpu_custom_call.1']
    %7 = vsyncpa [#allocation3], 0
    // Predicated region
    $region2: #{tpu_custom_call.1} parent=1 // pred_check
      _
    $region3: #{tpu_custom_call.1} parent=1 // pred_check_branch
      %9 = sbr.rel (0) target = $region5
    $region4: #{tpu_custom_call.1} parent=1 // pred_region
      _
    $region5: #{tpu_custom_call.1} parent=1 // pred_fallthru
      _
    // Predicated region
    $region6: #{tpu_custom_call.1} parent=1 // pred_check
      _
    $region7: #{tpu_custom_call.1} parent=1 // pred_check_branch
      %11 = sbr.rel (0) target = $region9
    $region8: #{tpu_custom_call.1} parent=1 // pred_region
      _
    $region9: #{tpu_custom_call.1} parent=1 // pred_fallthru
      _
    %v12 = vld [vmem:[%s0] sm:$0xff]
    %v13 = vld [vmem:[%s0 + $0x8] sm:$0xff]
    %v14 = vlaneseq
    %v15 = vand.u32 %v14, 127
    %16 = vset.pattern.permute.xlu0 0
    %17 = vperm.xlu0 %16, %v12
    %v18 = vpop.permute.xlu0 %17
    %19 = vset.pattern.permute.xlu0 0
    %20 = vperm.xlu0 %19, %v13
    %v21 = vpop.permute.xlu0 %20
    %vm22 = vcmp.eq.s32.totalorder %v15, %v18
    %vm23 = vcmp.eq.s32.totalorder %v15, %v21
    %v24 = vsel %vm22, 1, 0
    %v25 = vsel %vm23, 1, 0
    %v26 = vcvt.s32.f32 %v24
    %v27 = vcvt.s32.f32 %v25
    %v28 = vld [vmem:[%s1] sm:$0xff]
    %v29 = vld [vmem:[%s1 + $0x8] sm:$0xff]
    %vm30 = vcmask 130048
    %v32 = vsel %vm30, %v26, 0
    %v35 = vsel %vm30, %v27, 0
    %37 = vmatpush.msra.mxu0 0.0
    %38 = vmatpush.msra.mxu0 0.0
    %39 = vmatpush.msra.mxu0 0.0
    %40 = vmatpush.msra.mxu0 0.0
    %41 = vmatpush.msra.mxu0 0.0
    %42 = vmatpush.msra.mxu0 0.0
    %43 = vmatpush.msra.mxu0 0.0
    %44 = vmatpush.msra.mxu0 0.0
    %45 = vmatpush.msra.mxu0 0.0
    %46 = vmatpush.msra.mxu0 0.0
    %47 = vmatpush.msra.mxu0 0.0
    %48 = vmatpush.msra.mxu0 0.0
    %49 = vmatpush.msra.mxu0 0.0
    %50 = vmatpush.msra.mxu0 0.0
    %51 = vmatpush.msra.mxu0 %v29
    %52 = vmatpush.msra.mxu0 %v28
    %53 = vmatmul.f32.gmra.mxu0 %v32
    %v54 = vpop.f32.mrf.mxu0
    %v55 = vadd.f32 0.0, %v54
    %56 = vmatmul.f32.gmra.mxu0 %v35
    %v57 = vpop.f32.mrf.mxu0
    %v58 = vadd.f32 0.0, %v57
    %59 = vdwg.mxu0
    %60 = vst [vmem:[#allocation2] sm:$0xff] %v55
    %61 = vst [vmem:[#allocation2 + $0x8] sm:$0xff] %v58
    // Predicated region
    $region10: #{tpu_custom_call.1} parent=1 // pred_check
      _
    $region11: #{tpu_custom_call.1} parent=1 // pred_check_branch
      %63 = sbr.rel (0) target = $region13
    $region12: #{tpu_custom_call.1} parent=1 // pred_region
      %65 = vsyncadd [#allocation3], 0
      %s66 = sshll.u32 [#allocation2], 4
      %s67 = int_to_ptr.vmem [resolvable:$true] %s66
      %s68 = sshll.u32 %s2, 4
      %s69 = int_to_ptr.hbm [resolvable:$true] %s68
      %74 = dma.vmem_to_hbm [thread:$0]  %s67, 256, %s69, [#allocation3], 128, 128, 8
    $region13: #{tpu_custom_call.1} parent=1 // pred_fallthru
      _
    // Predicated region
    $region14: #{tpu_custom_call.1} parent=1 // pred_check
      _
    $region15: #{tpu_custom_call.1} parent=1 // pred_check_branch
      %76 = sbr.rel (0) target = $region17
    $region16: #{tpu_custom_call.1} parent=1 // pred_region
      %78 = dma.done [#allocation3], 256
    $region17: #{tpu_custom_call.1} parent=1 // pred_fallthru
      _
    %79 = vsyncpa [#allocation3], 1

// kernel: tpu_custom_call.1
$region0: #{tpu_custom_call.1}
  #allocation0 [shape = 'u32[]', space=smem, size = 0x4, offset = 0x4, fixed_abs, tag = 'smem constant byte address 0x4 - core index']
  #allocation1 [shape = 'u32[72,128]{1,0:T(1,128)}', space=vmem, size = 0x9000, scoped, tag = 'internal scratch']
  %s0 = inlined_call_operand.vmem [shape: s32[16,1], index: 0, kind: input, shape index: {}]
  %s1 = inlined_call_operand.vmem [shape: f32[16,128], index: 1, kind: input, shape index: {}]
  %s2 = inlined_call_operand.hbm [shape: f32[16,128], index: 2, kind: output, shape index: {}]
  %s3 = sld [smem:[#allocation0]]
  $region18: #{tpu_custom_call.1} parent=0
    _
  %s5 = ssub.s32 1, %s3
  %s6 = scalar_select 0, %s5, %s3
  $region1: #{tpu_custom_call.1} parent=0
    #allocation2 [shape = 'u8[8192]{0}', space=vmem, size = 0x2000, scoped, tag = 'output window, operand 0, single buffered']
    #allocation3 [shape = 's32[1]{0}', space=sflag, size = 0x4, scoped, tag = 'scoped memory for tpu_custom_call.1']
    %7 = vsyncpa [#allocation3], 0
    // Predicated region
    $region2: #{tpu_custom_call.1} parent=1 // pred_check
      _
    $region3: #{tpu_custom_call.1} parent=1 // pred_check_branch
      %9 = sbr.rel (0) target = $region5
    $region4: #{tpu_custom_call.1} parent=1 // pred_region
      _
    $region5: #{tpu_custom_call.1} parent=1 // pred_fallthru
      _
    // Predicated region
    $region6: #{tpu_custom_call.1} parent=1 // pred_check
      _
    $region7: #{tpu_custom_call.1} parent=1 // pred_check_branch
      %11 = sbr.rel (0) target = $region9
    $region8: #{tpu_custom_call.1} parent=1 // pred_region
      _
    $region9: #{tpu_custom_call.1} parent=1 // pred_fallthru
      _
    %v12 = vld [vmem:[%s0] sm:$0xff]
    %v13 = vld [vmem:[%s0 + $0x8] sm:$0xff]
    %v14 = vlaneseq
    %v15 = vand.u32 %v14, 127
    %16 = vset.pattern.permute.xlu0 0
    %17 = vperm.xlu0 %16, %v12
    %v18 = vpop.permute.xlu0 %17
    %19 = vset.pattern.permute.xlu0 0
    %20 = vperm.xlu0 %19, %v13
    %v21 = vpop.permute.xlu0 %20
    %vm22 = vcmp.eq.s32.totalorder %v15, %v18
    %vm23 = vcmp.eq.s32.totalorder %v15, %v21
    %v24 = vsel %vm22, 1, 0
    %v25 = vsel %vm23, 1, 0
    %v26 = vcvt.s32.f32 %v24
    %v27 = vcvt.s32.f32 %v25
    %v28 = vld [vmem:[%s1] sm:$0xff]
    %v29 = vld [vmem:[%s1 + $0x8] sm:$0xff]
    %vm30 = vcmask 130048
    %v32 = vsel %vm30, %v26, 0
    %v35 = vsel %vm30, %v27, 0
    %37 = vmatpush.msra.mxu0 0.0
    %38 = vmatpush.msra.mxu0 0.0
    %39 = vmatpush.msra.mxu0 0.0
    %40 = vmatpush.msra.mxu0 0.0
    %41 = vmatpush.msra.mxu0 0.0
    %42 = vmatpush.msra.mxu0 0.0
    %43 = vmatpush.msra.mxu0 0.0
    %44 = vmatpush.msra.mxu0 0.0
    %45 = vmatpush.msra.mxu0 0.0
    %46 = vmatpush.msra.mxu0 0.0
    %47 = vmatpush.msra.mxu0 0.0
    %48 = vmatpush.msra.mxu0 0.0
    %49 = vmatpush.msra.mxu0 0.0
    %50 = vmatpush.msra.mxu0 0.0
    %51 = vmatpush.msra.mxu0 %v29
    %52 = vmatpush.msra.mxu0 %v28
    %53 = vmatmul.f32.gmra.mxu0 %v32
    %v54 = vpop.f32.mrf.mxu0
    %v55 = vadd.f32 0.0, %v54
    %56 = vmatmul.f32.gmra.mxu0 %v35
    %v57 = vpop.f32.mrf.mxu0
    %v58 = vadd.f32 0.0, %v57
    %59 = vdwg.mxu0
    %60 = vst [vmem:[#allocation2] sm:$0xff] %v55
    %61 = vst [vmem:[#allocation2 + $0x8] sm:$0xff] %v58
    // Predicated region
    $region10: #{tpu_custom_call.1} parent=1 // pred_check
      _
    $region11: #{tpu_custom_call.1} parent=1 // pred_check_branch
      %63 = sbr.rel (0) target = $region13
    $region12: #{tpu_custom_call.1} parent=1 // pred_region
      %65 = vsyncadd [#allocation3], 0
      %s66 = sshll.u32 [#allocation2], 4
      %s67 = int_to_ptr.vmem [resolvable:$true] %s66
      %s68 = sshll.u32 %s2, 4
      %s69 = int_to_ptr.hbm [resolvable:$true] %s68
      %74 = dma.vmem_to_hbm [thread:$0]  %s67, 256, %s69, [#allocation3], 128, 128, 8
    $region13: #{tpu_custom_call.1} parent=1 // pred_fallthru
      _
    // Predicated region
    $region14: #{tpu_custom_call.1} parent=1 // pred_check
      _
    $region15: #{tpu_custom_call.1} parent=1 // pred_check_branch
      %76 = sbr.rel (0) target = $region17
    $region16: #{tpu_custom_call.1} parent=1 // pred_region
      %78 = dma.done [#allocation3], 256
    $region17: #{tpu_custom_call.1} parent=1 // pred_fallthru
      _
    %79 = vsyncpa [#allocation3], 1

</llo_original>
